<compile_context>
chip_gen: v7x
topology: tpu7x:2x2x1
jax: 0.10.0
libtpu: 0.0.40
codegen_flags: <defaults>
</compile_context>

<pallas_src>
import jax
import jax.numpy as jnp
from jax.experimental import pallas as pl
from jax.experimental.pallas import tpu as pltpu


def _choose_tb(B, S_pad):
    """Batch-tile size: ~1024 fused-matmul rows per grid step, TB a multiple
    of 8 (sublane tile) when the batch is actually tiled, and >=2 grid steps
    for large batches so v7x's two TensorCores both get work."""
    if B <= 8:
        return B  # tiny batch: one full-batch block (block == full dims)
    tb = min(max(1, 1024 // S_pad), B // 2)
    return max(8, (tb // 8) * 8)


def attention_sum(feat, wg, bg, wf, bf):
    """feat: (B, S, H) f32; wg: (H,1), bg: (1,1), wf: (H,O), bf: (1,O)."""
    B, S, H = feat.shape
    O = wf.shape[1]
    OP = O + 1

    # Pad S to a sublane multiple (keeps in-kernel reshapes tile-exact) and B
    # to a multiple of the batch tile.
    S_pad = ((S + 7) // 8) * 8
    TB = _choose_tb(B, S_pad)
    num_blocks = pl.cdiv(B, TB)
    B_pad = num_blocks * TB
    rows = TB * S_pad  # fused-matmul rows per grid step

    # Fuse the two projections into one (H, O+1) weight; gate is column O.
    w_fused = jnp.concatenate([wf, wg], axis=1).astype(jnp.bfloat16)   # (H, O+1)
    b_fused = jnp.concatenate([bf, bg], axis=1).astype(jnp.float32)    # (1, O+1)

    # Pad, cast the big feat stream to bf16, and present it as a lane-dense
    # 2-D (B_pad*S_pad, H) slab (layout plumbing done outside the kernel).
    feat_p = feat
    if B_pad != B or S_pad != S:
        feat_p = jnp.pad(feat, ((0, B_pad - B), (0, S_pad - S), (0, 0)))
    feat2d = feat_p.astype(jnp.bfloat16).reshape(B_pad * S_pad, H)

    # VMEM budget (double-buffered inputs/outputs + f32 intermediates).
    est = (2 * rows * H * 2            # feat tiles (bf16, double-buffered)
           + 2 * H * OP * 2            # fused weight (bf16)
           + 2 * OP * 4                # fused bias (f32)
           + 2 * TB * O * 4            # output tiles (f32)
           + 4 * rows * OP * 4)        # fused/f32 intermediates headroom
    vmem_limit = int(min(max(2 * est, 16 * 1024 * 1024), 64 * 1024 * 1024))

    def kernel(feat_ref, w_ref, b_ref, out_ref):
        # One fused MXU matmul for gate_nn + feat_nn, f32 accumulation.
        fused = jnp.dot(feat_ref[...], w_ref[...],
                        preferred_element_type=jnp.float32)      # (rows, O+1)
        fused = fused + b_ref[...]                               # bias in f32
        fused = fused.reshape(TB, S_pad, OP)                     # tile-exact

        gate_logits = fused[:, :, O:]                            # (TB, S_pad, 1)
        feat_out = fused[:, :, :O]                               # (TB, S_pad, O)

        if S_pad != S:  # mask padded sequence rows out of the softmax
            seq_idx = jax.lax.broadcasted_iota(jnp.int32, (TB, S_pad, 1), 1)
            gate_logits = jnp.where(seq_idx < S, gate_logits,
                                    jnp.float32(-1e30))

        # Softmax over the sequence axis (torch dim=1), all in f32.
        m = jnp.max(gate_logits, axis=1, keepdims=True)          # (TB, 1, 1)
        e = jnp.exp(gate_logits - m)                             # (TB, S_pad, 1)
        denom = jnp.sum(e, axis=1, keepdims=True)                # (TB, 1, 1)
        gate = e * pl.reciprocal(denom, approx=True)             # (TB, S_pad, 1)

        # Weighted sum over S on the lane-dense feat_out tile -> (TB, O).
        out_ref[...] = jnp.sum(feat_out * gate, axis=1).astype(out_ref.dtype)

    out = pl.pallas_call(
        kernel,
        out_shape=jax.ShapeDtypeStruct((B_pad, O), feat.dtype),
        grid_spec=pltpu.PrefetchScalarGridSpec(
            num_scalar_prefetch=0,
            grid=(num_blocks,),
            in_specs=[
                pl.BlockSpec((rows, H), lambda i: (i, 0)),    # feat slab tile
                pl.BlockSpec((H, OP), lambda i: (0, 0)),      # fused weight (resident)
                pl.BlockSpec((1, OP), lambda i: (0, 0)),      # fused bias (resident)
            ],
            out_specs=pl.BlockSpec((TB, O), lambda i: (i, 0)),  # lane-dense store
        ),
        compiler_params=pltpu.CompilerParams(
            dimension_semantics=("parallel",),
            vmem_limit_bytes=vmem_limit,
        ),
    )(feat2d, w_fused, b_fused)
    return out[:B]  # drop batch padding -> (B, O)


def attention_sum_ref(feat, wg, bg, wf, bf):
    gate = feat @ wg + bg                    # (B, S, 1)
    gate = jax.nn.softmax(gate, axis=1)      # softmax over sequence
    f = feat @ wf + bf                       # (B, S, O)
    return jnp.sum(f * gate, axis=1)         # (B, O)


if __name__ == "__main__":
    B, S, H, O = 2, 8, 32, 32

    key = jax.random.PRNGKey(0)
    k_feat, k_wg, k_bg, k_wf, k_bf = jax.random.split(key, 5)

    feat = jax.random.normal(k_feat, (B, S, H), dtype=jnp.float32)
    wg = jax.random.normal(k_wg, (H, 1), dtype=jnp.float32) * 0.1
    bg = jax.random.normal(k_bg, (1, 1), dtype=jnp.float32) * 0.1
    wf = jax.random.normal(k_wf, (H, O), dtype=jnp.float32) * 0.1
    bf = jax.random.normal(k_bf, (1, O), dtype=jnp.float32) * 0.1

    out = attention_sum(feat, wg, bg, wf, bf)
    out = jax.block_until_ready(out)

    # Reference evaluated on the same bf16-quantized operands the kernel feeds
    # the MXU (biases stay f32), so the check isolates the kernel math
    # (fused matmul / softmax / weighted reduce).
    q = lambda x: x.astype(jnp.bfloat16).astype(jnp.float32)
    ref = attention_sum_ref(q(feat), q(wg), bg, q(wf), bf)

    assert out.shape == (B, O)
    assert jnp.allclose(out, ref, atol=5e-3, rtol=5e-3), (
        f"mismatch vs reference: max abs err {jnp.max(jnp.abs(out - ref))}")

    print("KERNEL_OK")
</pallas_src>

<mosaic_0001>
module attributes {stable_mosaic.version = 11 : i64} {
  func.func @kernel(%arg0: i32, %arg1: memref<16x32xbf16, #tpu.memory_space<vmem>>, %arg2: memref<32x33xbf16, #tpu.memory_space<vmem>>, %arg3: memref<1x33xf32, #tpu.memory_space<vmem>>, %arg4: memref<2x32xf32, #tpu.memory_space<vmem>>) attributes {dimension_semantics = [#tpu.dimension_semantics<parallel>], iteration_bounds = array<i64: 1>, scalar_prefetch = 0 : i64, scratch_operands = 0 : i64, tpu.core_type = #tpu.core_type<tc>, window_params = [{transform_indices = @transform_0, window_bounds = array<i64: 16, 32>}, {pipeline_mode = #tpu.pipeline_mode<synchronous>, transform_indices = @transform_1, window_bounds = array<i64: 32, 33>}, {pipeline_mode = #tpu.pipeline_mode<synchronous>, transform_indices = @transform_2, window_bounds = array<i64: 1, 33>}, {transform_indices = @transform_3, window_bounds = array<i64: 2, 32>}]} {
    %c0 = arith.constant 0 : index
    %c0_0 = arith.constant 0 : index
    %0 = vector.load %arg1[%c0, %c0_0] : memref<16x32xbf16, #tpu.memory_space<vmem>>, vector<16x32xbf16>
    %c0_1 = arith.constant 0 : index
    %c0_2 = arith.constant 0 : index
    %1 = vector.load %arg2[%c0_1, %c0_2] : memref<32x33xbf16, #tpu.memory_space<vmem>>, vector<32x33xbf16>
    %cst = arith.constant dense<0.000000e+00> : vector<16x33xf32>
    %2 = tpu.matmul %0, %1, %cst {dimension_numbers = #tpu.dot_dimension_numbers<[1], [0], [0], [1], [0, 0, 1, 1], [], []>} : vector<16x32xbf16>, vector<32x33xbf16>, vector<16x33xf32> -> vector<16x33xf32>
    %c0_3 = arith.constant 0 : index
    %c0_4 = arith.constant 0 : index
    %3 = vector.load %arg3[%c0_3, %c0_4] : memref<1x33xf32, #tpu.memory_space<vmem>>, vector<1x33xf32>
    %4 = vector.broadcast %3 : vector<1x33xf32> to vector<16x33xf32>
    %5 = arith.addf %2, %4 : vector<16x33xf32>
    %6 = vector.shape_cast %5 : vector<16x33xf32> to vector<2x8x33xf32>
    %7 = vector.extract_strided_slice %6 {offsets = [0, 0, 32], sizes = [2, 8, 1], strides = [1, 1, 1]} : vector<2x8x33xf32> to vector<2x8x1xf32>
    %8 = vector.extract_strided_slice %6 {offsets = [0, 0, 0], sizes = [2, 8, 32], strides = [1, 1, 1]} : vector<2x8x33xf32> to vector<2x8x32xf32>
    %cst_5 = arith.constant dense<0xFF800000> : vector<2x1xf32>
    %9 = vector.multi_reduction <maximumf>, %7, %cst_5 [1] : vector<2x8x1xf32> to vector<2x1xf32>
    %10 = vector.shape_cast %9 : vector<2x1xf32> to vector<2x1x1xf32>
    %11 = vector.broadcast %10 : vector<2x1x1xf32> to vector<2x8x1xf32>
    %12 = arith.subf %7, %11 : vector<2x8x1xf32>
    %13 = math.exp %12 : vector<2x8x1xf32>
    %cst_6 = arith.constant dense<0.000000e+00> : vector<2x1xf32>
    %14 = vector.multi_reduction <add>, %13, %cst_6 [1] : vector<2x8x1xf32> to vector<2x1xf32>
    %15 = vector.shape_cast %14 : vector<2x1xf32> to vector<2x1x1xf32>
    %16 = tpu.reciprocal %15 {approx = true} : vector<2x1x1xf32> -> vector<2x1x1xf32>
    %17 = vector.broadcast %16 : vector<2x1x1xf32> to vector<2x8x1xf32>
    %18 = arith.mulf %13, %17 : vector<2x8x1xf32>
    %19 = vector.broadcast %18 : vector<2x8x1xf32> to vector<2x8x32xf32>
    %20 = arith.mulf %8, %19 : vector<2x8x32xf32>
    %cst_7 = arith.constant dense<0.000000e+00> : vector<2x32xf32>
    %21 = vector.multi_reduction <add>, %20, %cst_7 [1] : vector<2x8x32xf32> to vector<2x32xf32>
    %c0_8 = arith.constant 0 : index
    %c0_9 = arith.constant 0 : index
    %22 = vector.load %arg4[%c0_8, %c0_9] : memref<2x32xf32, #tpu.memory_space<vmem>>, vector<2x32xf32>
    tpu.vector_store %arg4[%c0_8, %c0_9], %21 {strides = array<i32>} : memref<2x32xf32, #tpu.memory_space<vmem>>, vector<2x32xf32>,
    return
  }
  func.func @transform_0(%arg0: i32) -> (i32, i32) {
    %c0_i32 = arith.constant 0 : i32
    %c0_i32_0 = arith.constant 0 : i32
    return %arg0, %c0_i32 : i32, i32
  }
  func.func @transform_1(%arg0: i32) -> (i32, i32) {
    %c0_i32 = arith.constant 0 : i32
    %c0_i32_0 = arith.constant 0 : i32
    %c0_i32_1 = arith.constant 0 : i32
    return %c0_i32, %c0_i32_0 : i32, i32
  }
  func.func @transform_2(%arg0: i32) -> (i32, i32) {
    %c0_i32 = arith.constant 0 : i32
    %c0_i32_0 = arith.constant 0 : i32
    %c0_i32_1 = arith.constant 0 : i32
    return %c0_i32, %c0_i32_0 : i32, i32
  }
  func.func @transform_3(%arg0: i32) -> (i32, i32) {
    %c0_i32 = arith.constant 0 : i32
    %c0_i32_0 = arith.constant 0 : i32
    return %arg0, %c0_i32 : i32, i32
  }
}

</mosaic_0001>

<llo_original>
// kernel: tpu_custom_call.1
$region0: #{tpu_custom_call.1}
  #allocation0 [shape = 'u32[]', space=smem, size = 0x4, offset = 0x4, fixed_abs, tag = 'smem constant byte address 0x4 - core index']
  #allocation1 [shape = 'u32[144,128]{1,0:T(1,128)}', space=vmem, size = 0x12000, scoped, tag = 'internal scratch']
  %s0 = inlined_call_operand.hbm [shape: bf16[16,32], index: 0, kind: input, shape index: {}]
  %s1 = inlined_call_operand.hbm [shape: bf16[32,33], index: 1, kind: input, shape index: {}]
  %s2 = inlined_call_operand.vmem [shape: f32[1,33], index: 2, kind: input, shape index: {}]
  %s3 = inlined_call_operand.hbm [shape: f32[2,32], index: 3, kind: output, shape index: {}]
  %s4 = sld [smem:[#allocation0]]
  $region30: #{tpu_custom_call.1} parent=0
    _
  %s6 = ssub.s32 1, %s4
  %s7 = scalar_select 0, %s6, %s4
  $region1: #{tpu_custom_call.1} parent=0
    #allocation2 [shape = 'u8[4096]{0}', space=vmem, size = 0x1000, scoped, tag = 'input window, operand 0, single buffered']
    #allocation3 [shape = 's32[1]{0}', space=sflag, size = 0x4, scoped, tag = 'scoped memory for tpu_custom_call.1']
    #allocation4 [shape = 's32[1]{0}', space=sflag, size = 0x4, scoped, tag = 'scoped memory for tpu_custom_call.1']
    #allocation5 [shape = 'u8[8192]{0}', space=vmem, size = 0x2000, scoped, tag = 'input window, operand 1, single buffered']
    #allocation6 [shape = 's32[1]{0}', space=sflag, size = 0x4, scoped, tag = 'scoped memory for tpu_custom_call.1']
    #allocation7 [shape = 'u8[1024]{0}', space=vmem, size = 0x400, scoped, tag = 'output window, operand 0, single buffered']
    %8 = vsyncpa [#allocation3], 0
    %9 = vsyncpa [#allocation6], 0
    %10 = vsyncpa [#allocation4], 0
    // Predicated region
    $region2: #{tpu_custom_call.1} parent=1 // pred_check
      _
    $region3: #{tpu_custom_call.1} parent=1 // pred_check_branch
      %12 = sbr.rel (0) target = $region5
    $region4: #{tpu_custom_call.1} parent=1 // pred_region
      %s14 = ssub.s32 128, 128
      %15 = vsyncadd [#allocation3], %s14
      %s16 = sshll.u32 [#allocation2], 4
      %s17 = int_to_ptr.vmem [resolvable:$true] %s16
      %22 = dma.hbm_to_vmem [thread:$0]  %s0, 128, %s17, [#allocation3], 64, 64, 4
    $region5: #{tpu_custom_call.1} parent=1 // pred_fallthru
      _
    // Predicated region
    $region6: #{tpu_custom_call.1} parent=1 // pred_check
      _
    $region7: #{tpu_custom_call.1} parent=1 // pred_check_branch
      %24 = sbr.rel (0) target = $region9
    $region8: #{tpu_custom_call.1} parent=1 // pred_region
      %s26 = ssub.s32 256, 256
      %27 = vsyncadd [#allocation6], %s26
      %s28 = sshll.u32 [#allocation5], 4
      %s29 = int_to_ptr.vmem [resolvable:$true] %s28
      %34 = dma.hbm_to_vmem [thread:$0]  %s1, 256, %s29, [#allocation6], 64, 64, 4
    $region9: #{tpu_custom_call.1} parent=1 // pred_fallthru
      _
    // Predicated region
    $region10: #{tpu_custom_call.1} parent=1 // pred_check
      _
    $region11: #{tpu_custom_call.1} parent=1 // pred_check_branch
      %36 = sbr.rel (0) target = $region13
    $region12: #{tpu_custom_call.1} parent=1 // pred_region
      _
    $region13: #{tpu_custom_call.1} parent=1 // pred_fallthru
      _
    // Predicated region
    $region14: #{tpu_custom_call.1} parent=1 // pred_check
      _
    $region15: #{tpu_custom_call.1} parent=1 // pred_check_branch
      %38 = sbr.rel (0) target = $region17
    $region16: #{tpu_custom_call.1} parent=1 // pred_region
      %39 = dma.done [#allocation3], 128
    $region17: #{tpu_custom_call.1} parent=1 // pred_fallthru
      _
    // Predicated region
    $region18: #{tpu_custom_call.1} parent=1 // pred_check
      _
    $region19: #{tpu_custom_call.1} parent=1 // pred_check_branch
      %41 = sbr.rel (0) target = $region21
    $region20: #{tpu_custom_call.1} parent=1 // pred_region
      %42 = dma.done [#allocation6], 256
    $region21: #{tpu_custom_call.1} parent=1 // pred_fallthru
      _
    %v44 = vld [vmem:[#allocation2] sm:$0xf]
    %v45 = vld [vmem:[#allocation2 + $0x4] sm:$0xf]
    %v46 = vld [vmem:[#allocation5] sm:$0xf]
    %v47 = vld [vmem:[#allocation5 + $0x4] sm:$0xf]
    %v48 = vld [vmem:[#allocation5 + $0x8] sm:$0xf]
    %v49 = vld [vmem:[#allocation5 + $0xc] sm:$0xf]
    %v50 = vld [vmem:[%s2] sm:$0x1]
    %v52 = vlaneseq
    %v53 = vshrl.u32 %v52, 7
    %v54 = vsub.s32 0, %v53
    %v55 = vrot.slane %v50, %v54
    %v59 = vunpack.c.l.b16 %v44
    %v60 = vunpack.c.l.b16 %v45
    %v61 = vpack.c.b16 %v60, %v59
    %v66 = vunpack.c.l.b16 %v46
    %v67 = vunpack.c.l.b16 %v47
    %v68 = vunpack.c.l.b16 %v48
    %v69 = vunpack.c.l.b16 %v49
    %v70 = vpack.c.b16 %v67, %v66
    %v71 = vpack.c.b16 %v69, %v68
    %vm74 = vcmask 261120
    %v76 = vsel %vm74, %v61, 0
    %78 = vmatprep.subr.bf16.mxu0 0
    %79 = vmatpush1.bf16.msra.mxu0 %v70
    %80 = vmatprep.subr.bf16.mxu0 0
    %81 = vmatpush1.bf16.msra.mxu0 %v71
    %82 = vmatprep.subr.bf16.mxu0 0
    %83 = vmatpush1.bf16.msra.mxu0 0
    %84 = vmatprep.subr.bf16.mxu0 0
    %85 = vmatpush1.bf16.msra.mxu0 0
    %86 = vmatprep.subr.bf16.mxu0 0
    %87 = vmatpush1.bf16.msra.mxu0 0
    %88 = vmatprep.subr.bf16.mxu0 0
    %89 = vmatpush1.bf16.msra.mxu0 0
    %90 = vmatprep.subr.bf16.mxu0 0
    %91 = vmatpush1.bf16.msra.mxu0 0
    %92 = vmatprep.subr.bf16.mxu0 0
    %93 = vmatpush1.bf16.msra.mxu0 0
    %94 = vmatprep.subr.bf16.mxu0 0
    %95 = vmatpush1.bf16.msra.mxu0 0
    %96 = vmatprep.subr.bf16.mxu0 0
    %97 = vmatpush1.bf16.msra.mxu0 0
    %98 = vmatprep.subr.bf16.mxu0 0
    %99 = vmatpush1.bf16.msra.mxu0 0
    %100 = vmatprep.subr.bf16.mxu0 0
    %101 = vmatpush1.bf16.msra.mxu0 0
    %102 = vmatprep.subr.bf16.mxu0 0
    %103 = vmatpush1.bf16.msra.mxu0 0
    %104 = vmatprep.subr.bf16.mxu0 0
    %105 = vmatpush1.bf16.msra.mxu0 0
    %106 = vmatprep.subr.bf16.mxu0 0
    %107 = vmatpush1.bf16.msra.mxu0 0
    %108 = vmatprep.subr.bf16.mxu0 0
    %109 = vmatpush1.bf16.msra.mxu0 0
    %110 = vmatprep.mubr.bf16.mxu0 0
    %111 = vmatmul.mubr.bf16.gmra.mrb[0].mxu0 %v76
    %v112 = vpop.f32.mrb[0].mxu0
    %v113 = vadd.f32 %v55, %v112
    %v114 = vpop.f32.mrb[0].mxu0
    %v115 = vpop.f32.mrb[0].mxu0
    %v116 = vadd.f32 %v55, %v115
    %v117 = vpop.f32.mrb[0].mxu0
    %118 = vdwg.mxu0
    %vm119 = vcmask 269568
    %v120 = vsel %vm119, %v113, -inf
    %v121 = vrot.slane %v120, 4
    %v122 = vmax.f32 %v120, %v121
    %v123 = vrot.slane %v122, 2
    %v124 = vmax.f32 %v122, %v123
    %v125 = vrot.slane %v124, 1
    %v126 = vmax.f32 %v124, %v125
    %v127 = vsel %vm119, %v116, -inf
    %v128 = vrot.slane %v127, 4
    %v129 = vmax.f32 %v127, %v128
    %v130 = vrot.slane %v129, 2
    %v131 = vmax.f32 %v129, %v130
    %v132 = vrot.slane %v131, 1
    %v133 = vmax.f32 %v131, %v132
    %v134 = vsub.f32 %v113, %v126
    %v135 = vsub.f32 %v116, %v133
    %v136 = vmul.f32 %v134, 1.442695
    %v137 = vpow.pop %v136
    %v138 = vmul.f32 %v135, 1.442695
    %v139 = vpow.pop %v138
    %v140 = vsel %vm119, %v137, 0.0
    %v141 = vrot.slane %v140, 4
    %v142 = vadd.f32 %v140, %v141
    %v143 = vrot.slane %v142, 2
    %v144 = vadd.f32 %v142, %v143
    %v145 = vrot.slane %v144, 1
    %v146 = vadd.f32 %v144, %v145
    %v147 = vsel %vm119, %v139, 0.0
    %v148 = vrot.slane %v147, 4
    %v149 = vadd.f32 %v147, %v148
    %v150 = vrot.slane %v149, 2
    %v151 = vadd.f32 %v149, %v150
    %v152 = vrot.slane %v151, 1
    %v153 = vadd.f32 %v151, %v152
    %v154 = vrcp.pop %v146
    %v155 = vrcp.pop %v153
    %v156 = vmul.f32 %v137, %v154
    %v157 = vmul.f32 %v139, %v155
    %159 = vset.pattern.permute.xlu0 32
    %160 = vperm.xlu0 %159, %v156
    %v161 = vpop.permute.xlu0 %160
    %164 = vset.pattern.permute.xlu0 32
    %165 = vperm.xlu0 %164, %v157
    %v166 = vpop.permute.xlu0 %165
    %v168 = vmul.f32 %v113, %v161
    %v169 = vmul.f32 %v116, %v166
    %v170 = vsel %vm74, %v168, 0.0
    %v171 = vrot.slane %v170, 4
    %v172 = vadd.f32 %v170, %v171
    %v173 = vrot.slane %v172, 2
    %v174 = vadd.f32 %v172, %v173
    %v175 = vrot.slane %v174, 1
    %v176 = vadd.f32 %v174, %v175
    %v177 = vsel %vm74, %v169, 0.0
    %v178 = vrot.slane %v177, 4
    %v179 = vadd.f32 %v177, %v178
    %v180 = vrot.slane %v179, 2
    %v181 = vadd.f32 %v179, %v180
    %v182 = vrot.slane %v181, 1
    %v183 = vadd.f32 %v181, %v182
    %vm186 = vcmask 1041409
    %v187 = vsel %vm186, %v183, %v176
    %vm189 = vcmask 254976
    %190 = vst.msk [vmem:[#allocation7] sm:$0x3] %vm189, %v187
    // Predicated region
    $region22: #{tpu_custom_call.1} parent=1 // pred_check
      _
    $region23: #{tpu_custom_call.1} parent=1 // pred_check_branch
      %192 = sbr.rel (0) target = $region25
    $region24: #{tpu_custom_call.1} parent=1 // pred_region
      %s194 = ssub.s32 32, 32
      %195 = vsyncadd [#allocation4], %s194
      %s197 = sshll.u32 [#allocation7], 4
      %s198 = int_to_ptr.vmem [resolvable:$true] %s197
      %200 = dma.vmem_to_hbm [thread:$0]  %s198, 32, %s3, [#allocation4]
    $region25: #{tpu_custom_call.1} parent=1 // pred_fallthru
      _
    // Predicated region
    $region26: #{tpu_custom_call.1} parent=1 // pred_check
      _
    $region27: #{tpu_custom_call.1} parent=1 // pred_check_branch
      %202 = sbr.rel (0) target = $region29
    $region28: #{tpu_custom_call.1} parent=1 // pred_region
      %203 = dma.done [#allocation4], 32
    $region29: #{tpu_custom_call.1} parent=1 // pred_fallthru
      _
    %204 = vsyncpa [#allocation3], 1
    %205 = vsyncpa [#allocation6], 1
    %206 = vsyncpa [#allocation4], 1

</llo_original>
